<compile_context>
chip_gen: v7x
topology: tpu7x:2x2x1
jax: 0.10.0
libtpu: 0.0.40
codegen_flags: <defaults>
</compile_context>

<pallas_src>
import functools

import jax
import jax.numpy as jnp
from jax.experimental import pallas as pl
from jax.experimental.pallas import tpu as pltpu


# ----------------------------- Pallas kernel ------------------------------ #
def _channel_attention_kernel(x_ref, w1_ref, w2_ref, o_ref, pool_ref, *, hw):
    # x_ref   : (n_tile, c_tile, hw_chunk)   activation chunk
    # w1_ref  : (C, hidden)                  fc1 weight (transposed, right-matmul)
    # w2_ref  : (hidden, C)                  fc2 weight (transposed, right-matmul)
    # o_ref   : (n_tile, 1, C)               sigmoid(fc2(relu(fc1(maxpool(x)))))
    # pool_ref: (c_blocks, n_tile, c_tile)   f32 running spatial max
    ci = pl.program_id(1)
    si = pl.program_id(2)
    last_c = pl.num_programs(1) - 1
    last_s = pl.num_programs(2) - 1

    xb = x_ref[...]
    n_tile, c_tile, hw_chunk = xb.shape

    # Ragged spatial tail: the padded region of the last block is undefined,
    # so mask it to -inf before the max (static no-op when hw % hw_chunk == 0).
    if hw % hw_chunk != 0:
        lane = jax.lax.broadcasted_iota(jnp.int32, xb.shape, dimension=2)
        remaining = hw - si * hw_chunk
        xb = jnp.where(lane < remaining, xb, -jnp.inf)

    # Per-chunk max over the spatial (lane) axis; max is order-preserving so
    # the f32 cast after the reduce is exact.
    chunk_max = jnp.max(xb, axis=-1).astype(jnp.float32)          # (n_tile, c_tile)

    @pl.when(si == 0)
    def _init():
        pool_ref[ci] = chunk_max

    @pl.when(si > 0)
    def _accumulate():
        pool_ref[ci] = jnp.maximum(pool_ref[ci], chunk_max)

    @pl.when(jnp.logical_and(ci == last_c, si == last_s))
    def _finalize():
        c_blocks = pool_ref.shape[0]
        hidden = w1_ref.shape[1]
        # fc1: channel reduction accumulated over the (static) channel blocks.
        h = jnp.zeros((n_tile, hidden), jnp.float32)
        for j in range(c_blocks):                       # static unroll
            h = h + jnp.dot(pool_ref[j].astype(w1_ref.dtype),
                            w1_ref[j * c_tile:(j + 1) * c_tile, :],
                            preferred_element_type=jnp.float32)
        h = jnp.maximum(h, 0.0)                                   # ReLU
        y = jnp.dot(h.astype(w2_ref.dtype), w2_ref[...],
                    preferred_element_type=jnp.float32)           # fc2
        y = 1.0 / (1.0 + jnp.exp(-y))                             # Sigmoid
        o_ref[...] = y[:, None, :].astype(o_ref.dtype)


# ----------------------------- HW queries ---------------------------------- #
def _vmem_capacity_bytes():
    try:
        info = pltpu.get_tpu_info()
        for name in ("vmem_capacity_bytes", "vmem_bytes", "vmem_size_bytes"):
            v = getattr(info, name, None)
            if isinstance(v, int) and v > 0:
                return v
    except Exception:
        pass
    return 64 << 20          # conservative: v7x per-TC physical VMEM


def _num_tensorcores():
    try:
        info = pltpu.get_tpu_info()
        for name in ("num_cores", "core_count", "num_tensorcores", "tensorcore_count"):
            v = getattr(info, name, None)
            if isinstance(v, int) and v > 0:
                return v
    except Exception:
        pass
    try:
        v = getattr(jax.devices()[0], "num_cores", None)
        if isinstance(v, int) and v > 0:
            return v
    except Exception:
        pass
    # Unknown: assume a megacore part (v7x).  On single-TC chips the only cost
    # of over-splitting the batch is ~0.35 us per extra grid step.
    return 2


# ----------------------------- tiling chooser ------------------------------ #
def _choose_tiling(n_tile, c, hw, itemsize, tile_budget):
    """Pick (c_tile, hw_chunk).

    Prefers the longest spatial chunk fitting the per-buffer budget; when N*C
    is large, splits channels (multiples of 8 dividing C) instead of letting
    the spatial chunk collapse below ~1024 lanes (keeps long contiguous DMA
    rows)."""
    def max_lanes(ct):
        return (tile_budget // max(1, n_tile * ct * itemsize)) // 128 * 128

    def chunk_for(ct):
        ml = max_lanes(ct)
        if hw <= 128 or ml >= hw:
            return hw                    # single full-extent spatial block (legal)
        return max(ml, 128)              # multiple of 128; ragged tail masked

    c_tile = c
    hw_chunk = chunk_for(c)
    target = hw if hw < 1024 else 1024
    if hw_chunk < target and c % 8 == 0 and c > 8:
        divisors = [d for d in range(8, c, 8) if c % d == 0]
        for ct in sorted(divisors, reverse=True):
            if chunk_for(ct) >= target:
                c_tile, hw_chunk = ct, chunk_for(ct)
                break
        else:
            if divisors:
                c_tile = divisors[0]
                hw_chunk = chunk_for(c_tile)
    return int(c_tile), int(hw_chunk)


# ------------------------------ wrapper ------------------------------------ #
def channel_attention_forward(x, w1_mat, w2_mat, *, hw_chunk=None, c_tile=None,
                              num_cores=None):
    """x: (N, C, H, W); w1_mat: (C, hidden); w2_mat: (hidden, C) -> (N, C, 1, 1)."""
    n, c, h, w = x.shape
    hw = h * w
    xf = x.reshape(n, c, hw)                 # free reshape (contiguous NCHW)
    hidden = w1_mat.shape[1]
    itemsize = x.dtype.itemsize

    vmem_cap = _vmem_capacity_bytes()
    tile_budget = min(vmem_cap // 4, 8 << 20)        # per-buffer x tile budget

    if num_cores is None:
        num_cores = _num_tensorcores()
    # Leading "parallel" batch axis so both v7x TensorCores get work.
    n_blocks = num_cores if (num_cores > 1 and n >= num_cores and n % num_cores == 0) else 1
    n_tile = n // n_blocks

    auto_c_tile, auto_hw_chunk = _choose_tiling(n_tile, c, hw, itemsize, tile_budget)
    c_tile = auto_c_tile if c_tile is None else c_tile
    hw_chunk = auto_hw_chunk if hw_chunk is None else hw_chunk

    assert c % c_tile == 0 and (c_tile == c or c_tile % 8 == 0), \
        "c_tile must divide C and be a multiple of 8 (or equal C)"
    assert hw_chunk == hw or hw_chunk % 128 == 0, \
        "hw_chunk must be a multiple of 128 (or the full H*W)"

    c_blocks = c // c_tile
    s_blocks = pl.cdiv(hw, hw_chunk)

    x_tile_bytes = n_tile * c_tile * hw_chunk * itemsize
    w_bytes = (w1_mat.size + w2_mat.size) * w1_mat.dtype.itemsize
    vmem_limit = int(min(vmem_cap,
                         max(32 << 20, 2 * x_tile_bytes + 4 * w_bytes + (16 << 20))))

    kernel = functools.partial(_channel_attention_kernel, hw=hw)

    out = pl.pallas_call(
        kernel,
        out_shape=jax.ShapeDtypeStruct((n, 1, c), x.dtype),
        grid=(n_blocks, c_blocks, s_blocks),
        in_specs=[
            pl.BlockSpec((n_tile, c_tile, hw_chunk), lambda ni, ci, si: (ni, ci, si)),
            # Tiny weights with a constant block index (loaded once, not re-DMAed).
            pl.BlockSpec((c, hidden), lambda ni, ci, si: (0, 0)),
            pl.BlockSpec((hidden, c), lambda ni, ci, si: (0, 0)),
        ],
        out_specs=pl.BlockSpec((n_tile, 1, c), lambda ni, ci, si: (ni, 0, 0)),
        scratch_shapes=[pltpu.VMEM((c_blocks, n_tile, c_tile), jnp.float32)],
        compiler_params=pltpu.CompilerParams(
            dimension_semantics=("parallel", "arbitrary", "arbitrary"),
            vmem_limit_bytes=vmem_limit,
        ),
    )(xf, w1_mat, w2_mat)

    return out.reshape(n, c, 1, 1)


class ChannelAttentionPallas:
    """Pallas equivalent of the PyTorch ChannelAttention forward pass."""

    def __init__(self, in_planes, ratio=16, *, key):
        del ratio  # NOTE: the PyTorch module hardcodes `in_planes // 16` and ignores `ratio`.
        assert in_planes >= 16, "ChannelAttention needs in_planes >= 16 (hidden = in_planes // 16)"
        hidden = in_planes // 16
        k1, k2 = jax.random.split(key)
        # nn.Conv2d(in_planes, hidden, 1, bias=False).weight : (hidden, in_planes, 1, 1)
        self.w_fc1 = 0.1 * jax.random.normal(k1, (hidden, in_planes, 1, 1), jnp.float32)
        # nn.Conv2d(hidden, in_planes, 1, bias=False).weight : (in_planes, hidden, 1, 1)
        self.w_fc2 = 0.1 * jax.random.normal(k2, (in_planes, hidden, 1, 1), jnp.float32)
        self.in_planes, self.hidden = in_planes, hidden

    def __call__(self, x, *, hw_chunk=None, c_tile=None, num_cores=None):
        # 1x1 convs on a (1,1) spatial map are plain matmuls on the channel vector.
        w1_mat = self.w_fc1.reshape(self.hidden, self.in_planes).T.astype(x.dtype)  # (C, hidden)
        w2_mat = self.w_fc2.reshape(self.in_planes, self.hidden).T.astype(x.dtype)  # (hidden, C)
        return channel_attention_forward(x, w1_mat, w2_mat, hw_chunk=hw_chunk,
                                         c_tile=c_tile, num_cores=num_cores)


# ------------------------------ reference ---------------------------------- #
def _reference(x, mod: ChannelAttentionPallas):
    pooled = jnp.max(x.astype(jnp.float32), axis=(2, 3))            # AdaptiveMaxPool2d(1)
    w1 = mod.w_fc1.reshape(mod.hidden, mod.in_planes)
    w2 = mod.w_fc2.reshape(mod.in_planes, mod.hidden)
    hi = jax.lax.Precision.HIGHEST
    h = jnp.maximum(jnp.dot(pooled, w1.T, precision=hi), 0.0)       # fc1 + ReLU
    y = jnp.dot(h, w2.T, precision=hi)                              # fc2
    return (1.0 / (1.0 + jnp.exp(-y)))[:, :, None, None]            # Sigmoid -> (N, C, 1, 1)


if __name__ == "__main__":
    key = jax.random.PRNGKey(0)
    k_x, k_x2, k_p, k_p2 = jax.random.split(key, 4)

    # ChannelAttention requires in_planes >= 16 (hidden = in_planes // 16); pick C=64.
    N, C, H, W = 2, 64, 16, 16
    x = jax.random.normal(k_x, (N, C, H, W), jnp.float32)
    mod = ChannelAttentionPallas(in_planes=C, key=k_p)
    ref = _reference(x, mod)

    # 1) default (auto tiling, batch "parallel" axis when N is divisible by TC count)
    out = jax.block_until_ready(mod(x))
    assert out.shape == ref.shape == (N, C, 1, 1)
    assert jnp.allclose(out, ref, atol=2e-3, rtol=0), "default path mismatch"

    # 2) forced multi-chunk spatial streaming + channel-block accumulation path
    out2 = jax.block_until_ready(mod(x, hw_chunk=128, c_tile=8))
    assert jnp.allclose(out2, ref, atol=2e-3, rtol=0), "chunked path mismatch"

    # 3) bf16 activations (halved HBM traffic); f32 running max / accumulation inside
    out_bf16 = jax.block_until_ready(mod(x.astype(jnp.bfloat16)))
    assert jnp.allclose(out_bf16.astype(jnp.float32), ref, atol=5e-2, rtol=0), \
        "bf16 path mismatch"

    # 4) ragged spatial extent (H*W not a multiple of 128) -> in-kernel -inf masking
    C2 = 32
    x_rag = jax.random.normal(k_x2, (2, C2, 13, 13), jnp.float32)
    mod2 = ChannelAttentionPallas(in_planes=C2, key=k_p2)
    ref_rag = _reference(x_rag, mod2)
    out_rag = jax.block_until_ready(mod2(x_rag, hw_chunk=128))
    assert jnp.allclose(out_rag, ref_rag, atol=2e-3, rtol=0), "ragged path mismatch"

    print("KERNEL_OK")
</pallas_src>

<mosaic_0001>
module attributes {stable_mosaic.version = 11 : i64} {
  func.func @_channel_attention_kernel(%arg0: i32, %arg1: i32, %arg2: i32, %arg3: memref<1x64x256xf32, #tpu.memory_space<vmem>>, %arg4: memref<64x4xf32, #tpu.memory_space<vmem>>, %arg5: memref<4x64xf32, #tpu.memory_space<vmem>>, %arg6: memref<1x1x64xf32, #tpu.memory_space<vmem>>, %arg7: memref<1x1x64xf32, #tpu.memory_space<vmem>>) attributes {dimension_semantics = [#tpu.dimension_semantics<parallel>, #tpu.dimension_semantics<arbitrary>, #tpu.dimension_semantics<arbitrary>], iteration_bounds = array<i64: 2, 1, 1>, scalar_prefetch = 0 : i64, scratch_operands = 1 : i64, tpu.core_type = #tpu.core_type<tc>, window_params = [{transform_indices = @transform_0, window_bounds = array<i64: 1, 64, 256>}, {pipeline_mode = #tpu.pipeline_mode<synchronous>, transform_indices = @transform_1, window_bounds = array<i64: 64, 4>}, {pipeline_mode = #tpu.pipeline_mode<synchronous>, transform_indices = @transform_2, window_bounds = array<i64: 4, 64>}, {transform_indices = @transform_3, window_bounds = array<i64: 1, 1, 64>}]} {
    %c0 = arith.constant 0 : index
    %c0_0 = arith.constant 0 : index
    %c0_1 = arith.constant 0 : index
    %0 = vector.load %arg3[%c0, %c0_0, %c0_1] : memref<1x64x256xf32, #tpu.memory_space<vmem>>, vector<1x64x256xf32>
    %cst = arith.constant dense<0xFF800000> : vector<1x64xf32>
    %1 = vector.multi_reduction <maximumf>, %0, %cst [2] : vector<1x64x256xf32> to vector<1x64xf32>
    %c0_i32 = arith.constant 0 : i32
    %2 = arith.cmpi eq, %arg2, %c0_i32 : i32
    %3 = arith.extui %2 : i1 to i32
    %c0_i32_2 = arith.constant 0 : i32
    %4 = arith.cmpi ne, %3, %c0_i32_2 : i32
    scf.if %4 {
      %13 = arith.index_cast %arg1 : i32 to index
      %c0_8 = arith.constant 0 : index
      %c0_9 = arith.constant 0 : index
      %14 = vector.load %arg7[%13, %c0_8, %c0_9] : memref<1x1x64xf32, #tpu.memory_space<vmem>>, vector<1x1x64xf32>
      %15 = vector.shape_cast %14 : vector<1x1x64xf32> to vector<1x64xf32>
      %16 = vector.shape_cast %1 : vector<1x64xf32> to vector<1x1x64xf32>
      tpu.vector_store %arg7[%13, %c0_8, %c0_9], %16 {strides = array<i32>} : memref<1x1x64xf32, #tpu.memory_space<vmem>>, vector<1x1x64xf32>,
    } else {
    }
    %c0_i32_3 = arith.constant 0 : i32
    %5 = arith.cmpi sgt, %arg2, %c0_i32_3 : i32
    %6 = arith.extui %5 : i1 to i32
    %c0_i32_4 = arith.constant 0 : i32
    %7 = arith.cmpi ne, %6, %c0_i32_4 : i32
    scf.if %7 {
      %13 = arith.index_cast %arg1 : i32 to index
      %c0_8 = arith.constant 0 : index
      %c0_9 = arith.constant 0 : index
      %14 = vector.load %arg7[%13, %c0_8, %c0_9] : memref<1x1x64xf32, #tpu.memory_space<vmem>>, vector<1x1x64xf32>
      %15 = vector.shape_cast %14 : vector<1x1x64xf32> to vector<1x64xf32>
      %16 = arith.maximumf %15, %1 : vector<1x64xf32>
      %17 = arith.index_cast %arg1 : i32 to index
      %c0_10 = arith.constant 0 : index
      %c0_11 = arith.constant 0 : index
      %18 = vector.load %arg7[%17, %c0_10, %c0_11] : memref<1x1x64xf32, #tpu.memory_space<vmem>>, vector<1x1x64xf32>
      %19 = vector.shape_cast %18 : vector<1x1x64xf32> to vector<1x64xf32>
      %20 = vector.shape_cast %16 : vector<1x64xf32> to vector<1x1x64xf32>
      tpu.vector_store %arg7[%17, %c0_10, %c0_11], %20 {strides = array<i32>} : memref<1x1x64xf32, #tpu.memory_space<vmem>>, vector<1x1x64xf32>,
    } else {
    }
    %c0_i32_5 = arith.constant 0 : i32
    %8 = arith.cmpi eq, %arg1, %c0_i32_5 : i32
    %c0_i32_6 = arith.constant 0 : i32
    %9 = arith.cmpi eq, %arg2, %c0_i32_6 : i32
    %10 = arith.andi %8, %9 : i1
    %11 = arith.extui %10 : i1 to i32
    %c0_i32_7 = arith.constant 0 : i32
    %12 = arith.cmpi ne, %11, %c0_i32_7 : i32
    scf.if %12 {
      %cst_8 = arith.constant 0.000000e+00 : f32
      %13 = vector.broadcast %cst_8 : f32 to vector<1x4xf32>
      %c0_9 = arith.constant 0 : index
      %c0_10 = arith.constant 0 : index
      %c0_11 = arith.constant 0 : index
      %14 = vector.load %arg7[%c0_9, %c0_10, %c0_11] : memref<1x1x64xf32, #tpu.memory_space<vmem>>, vector<1x1x64xf32>
      %15 = vector.shape_cast %14 : vector<1x1x64xf32> to vector<1x64xf32>
      %c0_12 = arith.constant 0 : index
      %c0_13 = arith.constant 0 : index
      %16 = vector.load %arg4[%c0_12, %c0_13] : memref<64x4xf32, #tpu.memory_space<vmem>>, vector<64x4xf32>
      %cst_14 = arith.constant dense<0.000000e+00> : vector<1x4xf32>
      %17 = tpu.matmul %15, %16, %cst_14 {dimension_numbers = #tpu.dot_dimension_numbers<[1], [0], [0], [1], [0, 0, 1, 1], [], []>} : vector<1x64xf32>, vector<64x4xf32>, vector<1x4xf32> -> vector<1x4xf32>
      %18 = arith.addf %13, %17 : vector<1x4xf32>
      %cst_15 = arith.constant 0.000000e+00 : f32
      %19 = vector.broadcast %cst_15 : f32 to vector<1x4xf32>
      %20 = arith.maximumf %18, %19 : vector<1x4xf32>
      %c0_16 = arith.constant 0 : index
      %c0_17 = arith.constant 0 : index
      %21 = vector.load %arg5[%c0_16, %c0_17] : memref<4x64xf32, #tpu.memory_space<vmem>>, vector<4x64xf32>
      %cst_18 = arith.constant dense<0.000000e+00> : vector<1x64xf32>
      %22 = tpu.matmul %20, %21, %cst_18 {dimension_numbers = #tpu.dot_dimension_numbers<[1], [0], [0], [1], [0, 0, 1, 1], [], []>} : vector<1x4xf32>, vector<4x64xf32>, vector<1x64xf32> -> vector<1x64xf32>
      %cst_19 = arith.constant 0.000000e+00 : f32
      %23 = vector.broadcast %cst_19 : f32 to vector<1x64xf32>
      %24 = arith.subf %23, %22 : vector<1x64xf32>
      %25 = math.exp %24 : vector<1x64xf32>
      %cst_20 = arith.constant 1.000000e+00 : f32
      %26 = vector.broadcast %cst_20 : f32 to vector<1x64xf32>
      %27 = arith.addf %26, %25 : vector<1x64xf32>
      %cst_21 = arith.constant 1.000000e+00 : f32
      %28 = vector.broadcast %cst_21 : f32 to vector<1x64xf32>
      %29 = arith.divf %28, %27 : vector<1x64xf32>
      %30 = vector.shape_cast %29 : vector<1x64xf32> to vector<1x1x64xf32>
      %c0_22 = arith.constant 0 : index
      %c0_23 = arith.constant 0 : index
      %c0_24 = arith.constant 0 : index
      %31 = vector.load %arg6[%c0_22, %c0_23, %c0_24] : memref<1x1x64xf32, #tpu.memory_space<vmem>>, vector<1x1x64xf32>
      tpu.vector_store %arg6[%c0_22, %c0_23, %c0_24], %30 {strides = array<i32>} : memref<1x1x64xf32, #tpu.memory_space<vmem>>, vector<1x1x64xf32>,
    } else {
    }
    return
  }
  func.func @transform_0(%arg0: i32, %arg1: i32, %arg2: i32) -> (i32, i32, i32) {
    %c0_i32 = arith.constant 0 : i32
    return %arg0, %arg1, %arg2 : i32, i32, i32
  }
  func.func @transform_1(%arg0: i32, %arg1: i32, %arg2: i32) -> (i32, i32) {
    %c0_i32 = arith.constant 0 : i32
    %c0_i32_0 = arith.constant 0 : i32
    %c0_i32_1 = arith.constant 0 : i32
    return %c0_i32, %c0_i32_0 : i32, i32
  }
  func.func @transform_2(%arg0: i32, %arg1: i32, %arg2: i32) -> (i32, i32) {
    %c0_i32 = arith.constant 0 : i32
    %c0_i32_0 = arith.constant 0 : i32
    %c0_i32_1 = arith.constant 0 : i32
    return %c0_i32, %c0_i32_0 : i32, i32
  }
  func.func @transform_3(%arg0: i32, %arg1: i32, %arg2: i32) -> (i32, i32, i32) {
    %c0_i32 = arith.constant 0 : i32
    %c0_i32_0 = arith.constant 0 : i32
    %c0_i32_1 = arith.constant 0 : i32
    return %arg0, %c0_i32, %c0_i32_0 : i32, i32, i32
  }
}

</mosaic_0001>

<llo_original>
// kernel: tpu_custom_call.1
$region0: #{tpu_custom_call.1}
  #allocation0 [shape = 'u32[]', space=smem, size = 0x4, offset = 0x4, fixed_abs, tag = 'smem constant byte address 0x4 - core index']
  #allocation1 [shape = 'u32[144,128]{1,0:T(1,128)}', space=vmem, size = 0x12000, scoped, tag = 'internal scratch']
  #allocation2 [shape = 'f32[1,1,64]{2,1,0:T(1,128)}', space=vmem, size = 0x200, scoped, tag = 'scratch operand']
  %s0 = inlined_call_operand.hbm [shape: f32[2,64,256], index: 0, kind: input, shape index: {}]
  %s1 = inlined_call_operand.vmem [shape: f32[64,4], index: 1, kind: input, shape index: {}]
  %s2 = inlined_call_operand.vmem [shape: f32[4,64], index: 2, kind: input, shape index: {}]
  %s3 = inlined_call_operand.hbm [shape: f32[2,1,64], index: 3, kind: output, shape index: {}]
  %s4 = sld [smem:[#allocation0]]
  $region61: #{tpu_custom_call.1} parent=0
    _
  %s6 = ssub.s32 1, %s4
  %s7 = scalar_select 0, %s6, %s4
  $region1: #{tpu_custom_call.1} parent=0
    #allocation3 [shape = 'u8[131072]{0}', space=vmem, size = 0x20000, scoped, tag = 'input window, operand 0']
    #allocation4 [shape = 's32[2]{0}', space=sflag, size = 0x8, scoped, tag = 'scoped memory for tpu_custom_call.1']
    #allocation5 [shape = 's32[2]{0}', space=sflag, size = 0x8, scoped, tag = 'scoped memory for tpu_custom_call.1']
    #allocation6 [shape = 'u8[1024]{0}', space=vmem, size = 0x400, scoped, tag = 'output window, operand 0']
    %8 = vsyncpa [#allocation4], 0
    %s9 = scalar_lea.sflag [#allocation4], 1
    %10 = vsyncpa %s9, 0
    %11 = vsyncpa [#allocation5], 0
    %s12 = scalar_lea.sflag [#allocation5], 1
    %13 = vsyncpa %s12, 0
    loop: start=0, step=1, limit=4
    $region2: #{tpu_custom_call.1} parent=1 // loop_pre_header
      _
    $region3: #{tpu_custom_call.1} parent=1 // loop_header
      %s15 = sphi 0, %s19
      %p16 = scmp.ge.s32.totalorder %s15, 4
      %s22 = sphi 0, %s41
      %s23 = sphi 0, %s37
      %s24 = sphi 0, %s33
      %s25 = sphi 0, %s22
      %s26 = sphi 0, %s23
      %s27 = sphi 0, %s24
      %s28 = sphi 0, %s25
      %s29 = sphi 0, %s26
      %s30 = sphi 0, %s27
      %s48 = sphi 0, %s50
      %s51 = sphi 0, %s48
      %s52 = sphi 0, %s51
      %s68 = sphi 0, %s52
      %s72 = sphi 0, %s72
      %s74 = sphi 0, %s72
      %s75 = sphi 0, %s74
      %s89 = sphi 0, %s75
      %s93 = sphi 0, %s93
      %s95 = sphi 0, %s93
      %s96 = sphi 0, %s95
      %s110 = sphi 0, %s96
      %s116 = sphi 0, %s118
      %s119 = sphi 0, %s116
      %s120 = sphi 0, %s119
      %s136 = sphi 0, %s120
    $region4: #{tpu_custom_call.1} parent=1 // loop_header_branch
      %18 = sbr.rel (%p16) target = $region8
    $region5: #{tpu_custom_call.1} parent=1 // loop_body
      %s20 = ssub.s32 %s15, 1
      %s21 = ssub.s32 %s15, 2
      %s31 = sadd.s32 1, %s24
      %p32 = scmp.ge.s32.totalorder %s31, 1
      %s33 = scalar_select %p32, 0, %s31
      %s34 = sadd.s32 1, %s23
      %s35 = scalar_select %p32, %s34, %s23
      %p36 = scmp.ge.s32.totalorder %s35, 1
      %s37 = scalar_select %p36, 0, %s35
      %s38 = sadd.s32 1, %s22
      %s39 = scalar_select %p36, %s38, %s22
      %p40 = scmp.ge.s32.totalorder %s39, 2
      %s41 = scalar_select %p40, 0, %s39
      %s42 = ssub.s32 %s22, %s41
      %s43 = ssub.s32 %s23, %s37
      %s44 = sor.u32 %s42, %s43
      %s45 = ssub.s32 %s24, %s33
      %s46 = sor.u32 %s44, %s45
      %p47 = scmp.eq.s32.totalorder %s46, 0
      %s49 = sadd.s32 %s48, 1
      %s50 = scalar_select %p47, %s48, %s49
      %p53 = pneg %p47
      %p54 = scmp.eq.s32.totalorder %s15, 1
      %p55 = por %p53, %p54
      %p56 = scmp.ne.s32.totalorder %s48, %s51
      %p57 = scmp.eq.s32.totalorder %s15, 0
      %p58 = por %p56, %p57
      %p59 = scmp.ne.s32.totalorder %s48, %s51
      %p60 = scmp.eq.s32.totalorder %s20, 1
      %p61 = por %p59, %p60
      %p62 = scmp.ne.s32.totalorder %s51, %s52
      %p63 = scmp.eq.s32.totalorder %s20, 0
      %p64 = por %p62, %p63
      %p65 = scmp.ne.s32.totalorder %s51, %s52
      %p66 = scmp.eq.s32.totalorder %s21, 1
      %p67 = por %p65, %p66
      %p69 = scmp.ne.s32.totalorder %s52, %s68
      %p70 = scmp.eq.s32.totalorder %s21, 0
      %p71 = por %p69, %p70
      %s73 = sadd.s32 %s72, 1
      %p76 = scmp.eq.s32.totalorder %s15, 1
      %p77 = scmp.ne.s32.totalorder %s72, %s74
      %p78 = scmp.eq.s32.totalorder %s15, 0
      %p79 = por %p77, %p78
      %p80 = scmp.ne.s32.totalorder %s72, %s74
      %p81 = scmp.eq.s32.totalorder %s20, 1
      %p82 = por %p80, %p81
      %p83 = scmp.ne.s32.totalorder %s74, %s75
      %p84 = scmp.eq.s32.totalorder %s20, 0
      %p85 = por %p83, %p84
      %p86 = scmp.ne.s32.totalorder %s74, %s75
      %p87 = scmp.eq.s32.totalorder %s21, 1
      %p88 = por %p86, %p87
      %p90 = scmp.ne.s32.totalorder %s75, %s89
      %p91 = scmp.eq.s32.totalorder %s21, 0
      %p92 = por %p90, %p91
      %s94 = sadd.s32 %s93, 1
      %p97 = scmp.eq.s32.totalorder %s15, 1
      %p98 = scmp.ne.s32.totalorder %s93, %s95
      %p99 = scmp.eq.s32.totalorder %s15, 0
      %p100 = por %p98, %p99
      %p101 = scmp.ne.s32.totalorder %s93, %s95
      %p102 = scmp.eq.s32.totalorder %s20, 1
      %p103 = por %p101, %p102
      %p104 = scmp.ne.s32.totalorder %s95, %s96
      %p105 = scmp.eq.s32.totalorder %s20, 0
      %p106 = por %p104, %p105
      %p107 = scmp.ne.s32.totalorder %s95, %s96
      %p108 = scmp.eq.s32.totalorder %s21, 1
      %p109 = por %p107, %p108
      %p111 = scmp.ne.s32.totalorder %s96, %s110
      %p112 = scmp.eq.s32.totalorder %s21, 0
      %p113 = por %p111, %p112
      %s114 = ssub.s32 %s22, %s41
      %p115 = scmp.eq.s32.totalorder %s114, 0
      %s117 = sadd.s32 %s116, 1
      %s118 = scalar_select %p115, %s116, %s117
      %p121 = pneg %p115
      %p122 = scmp.eq.s32.totalorder %s15, 1
      %p123 = por %p121, %p122
      %p124 = scmp.ne.s32.totalorder %s116, %s119
      %p125 = scmp.eq.s32.totalorder %s15, 0
      %p126 = por %p124, %p125
      %p127 = scmp.ne.s32.totalorder %s116, %s119
      %p128 = scmp.eq.s32.totalorder %s20, 1
      %p129 = por %p127, %p128
      %p130 = scmp.ne.s32.totalorder %s119, %s120
      %p131 = scmp.eq.s32.totalorder %s20, 0
      %p132 = por %p130, %p131
      %p133 = scmp.ne.s32.totalorder %s119, %s120
      %p134 = scmp.eq.s32.totalorder %s21, 1
      %p135 = por %p133, %p134
      %p137 = scmp.ne.s32.totalorder %s120, %s136
      %p138 = scmp.eq.s32.totalorder %s21, 0
      %p139 = por %p137, %p138
      %p140 = scmp.le.s32.totalorder 1, %s15
      %p141 = scmp.lt.s32.totalorder %s15, 3
      %p142 = pnand %p140, %p141
      %p143 = pneg %p142
      // Predicated region
      $region9: #{tpu_custom_call.1} parent=5 // pred_check
        _
      $region10: #{tpu_custom_call.1} parent=5 // pred_check_branch
        %145 = sbr.rel (%p142) target = $region12
      $region11: #{tpu_custom_call.1} parent=5 // pred_region
        %s146 = ssub.s32 %s15, 1
        // Predicated region
        $region13: #{tpu_custom_call.1} parent=11 // pred_check
          %p147 = pneg %p85
        $region14: #{tpu_custom_call.1} parent=11 // pred_check_branch
          %149 = sbr.rel (%p147) target = $region16
        $region15: #{tpu_custom_call.1} parent=11 // pred_region
          _
        $region16: #{tpu_custom_call.1} parent=11 // pred_fallthru
          _
        // Predicated region
        $region17: #{tpu_custom_call.1} parent=11 // pred_check
          %p150 = pneg %p106
        $region18: #{tpu_custom_call.1} parent=11 // pred_check_branch
          %152 = sbr.rel (%p150) target = $region20
        $region19: #{tpu_custom_call.1} parent=11 // pred_region
          _
        $region20: #{tpu_custom_call.1} parent=11 // pred_fallthru
          _
      $region12: #{tpu_custom_call.1} parent=5 // pred_fallthru
        _
      %p153 = scmp.lt.s32.totalorder %s15, 2
      // Predicated region
      $region21: #{tpu_custom_call.1} parent=5 // pred_check
        %p154 = pneg %p153
      $region22: #{tpu_custom_call.1} parent=5 // pred_check_branch
        %156 = sbr.rel (%p154) target = $region24
      $region23: #{tpu_custom_call.1} parent=5 // pred_region
        // Predicated region
        $region25: #{tpu_custom_call.1} parent=23 // pred_check
          %p157 = pneg %p58
        $region26: #{tpu_custom_call.1} parent=23 // pred_check_branch
          %159 = sbr.rel (%p157) target = $region28
        $region27: #{tpu_custom_call.1} parent=23 // pred_region
          %s160 = sand.u32 %s48, 1
          %s161 = scalar_lea.sflag [#allocation4], %s160
          %s162 = sand.u32 %s48, 1
          %s163 = smul.addr %s162, 128
          %s164 = scalar_lea.vmem [#allocation3], %s163
          %s165 = smul.u32 8, %s23
          %s166 = smul.u32 2, %s24
          %s168 = ssub.s32 2048, 2048
          %169 = vsyncadd %s161, %s168
          %s170 = smul.addr %s165, 2
          %s171 = sadd.s32 %s166, %s170
          %s172 = smul.addr %s22, 16
          %s173 = sadd.s32 %s171, %s172
          %s174 = smul.addr %s173, 128
          %s175 = scalar_lea.hbm %s0, %s174
          %s176 = sshll.u32 %s164, 4
          %s177 = int_to_ptr.vmem [resolvable:$true] %s176
          %182 = dma.hbm_to_vmem [thread:$0]  %s175, 2048, %s177, %s161, 256, 256, 16
        $region28: #{tpu_custom_call.1} parent=23 // pred_fallthru
          _
      $region24: #{tpu_custom_call.1} parent=5 // pred_fallthru
        _
      %p183 = scmp.le.s32.totalorder 1, %s15
      %p184 = scmp.lt.s32.totalorder %s15, 3
      %p185 = pnand %p183, %p184
      %p186 = pneg %p185
      // Predicated region
      $region29: #{tpu_custom_call.1} parent=5 // pred_check
        _
      $region30: #{tpu_custom_call.1} parent=5 // pred_check_branch
        %188 = sbr.rel (%p185) target = $region32
      $region31: #{tpu_custom_call.1} parent=5 // pred_region
        %s189 = ssub.s32 %s15, 1
        %s190 = sand.u32 %s51, 1
        %s191 = scalar_lea.sflag [#allocation4], %s190
        %s192 = sand.u32 %s51, 1
        %s193 = smul.addr %s192, 128
        %s194 = scalar_lea.vmem [#allocation3], %s193
        // Predicated region
        $region33: #{tpu_custom_call.1} parent=31 // pred_check
          %p195 = pneg %p64
        $region34: #{tpu_custom_call.1} parent=31 // pred_check_branch
          %197 = sbr.rel (%p195) target = $region36
        $region35: #{tpu_custom_call.1} parent=31 // pred_region
          %198 = dma.done %s191, 2048
        $region36: #{tpu_custom_call.1} parent=31 // pred_fallthru
          _
        %s199 = sand.u32 %s51, 1
        %s200 = scalar_lea.sflag [#allocation4], %s199
        %s201 = sand.u32 %s51, 1
        %s202 = smul.addr %s201, 128
        %s203 = scalar_lea.vmem [#allocation3], %s202
        %p204 = pneg %p64
        %p205 = pneg %p61
        %p206 = pneg %p85
        %p207 = pneg %p82
        %p208 = pneg %p106
        %p209 = pneg %p103
        %p210 = pneg %p132
        %p211 = pneg %p129
        %s212 = sand.u32 %s119, 1
        %s213 = scalar_lea.sflag [#allocation5], %s212
        %s214 = sand.u32 %s119, 1
        %s215 = scalar_lea.vmem [#allocation6], %s214
        %s216 = smul.u32 8, %s26
        %s217 = smul.u32 2, %s27
        %v218 = vld [vmem:[%s194] sm:$0xff]
        %v219 = vld [vmem:[%s194 + $0x8] sm:$0xff]
        %v220 = vld [vmem:[%s194 + $0x10] sm:$0xff]
        %v221 = vld [vmem:[%s194 + $0x18] sm:$0xff]
        %v222 = vld [vmem:[%s194 + $0x20] sm:$0xff]
        %v223 = vld [vmem:[%s194 + $0x28] sm:$0xff]
        %v224 = vld [vmem:[%s194 + $0x30] sm:$0xff]
        %v225 = vld [vmem:[%s194 + $0x38] sm:$0xff]
        %v226 = vld [vmem:[%s194 + $0x40] sm:$0xff]
        %v227 = vld [vmem:[%s194 + $0x48] sm:$0xff]
        %v228 = vld [vmem:[%s194 + $0x50] sm:$0xff]
        %v229 = vld [vmem:[%s194 + $0x58] sm:$0xff]
        %v230 = vld [vmem:[%s194 + $0x60] sm:$0xff]
        %v231 = vld [vmem:[%s194 + $0x68] sm:$0xff]
        %v232 = vld [vmem:[%s194 + $0x70] sm:$0xff]
        %v233 = vld [vmem:[%s194 + $0x78] sm:$0xff]
        %v234 = vmax.f32 %v218, %v219
        %235 = vmax.xlane.f32.xlu0 %v234
        %v236 = vpop.xlane.xlu0 %235
        %v237 = vmax.f32 %v220, %v221
        %238 = vmax.xlane.f32.xlu0 %v237
        %v239 = vpop.xlane.xlu0 %238
        %v240 = vmax.f32 %v222, %v223
        %241 = vmax.xlane.f32.xlu0 %v240
        %v242 = vpop.xlane.xlu0 %241
        %v243 = vmax.f32 %v224, %v225
        %244 = vmax.xlane.f32.xlu0 %v243
        %v245 = vpop.xlane.xlu0 %244
        %v246 = vmax.f32 %v226, %v227
        %247 = vmax.xlane.f32.xlu0 %v246
        %v248 = vpop.xlane.xlu0 %247
        %v249 = vmax.f32 %v228, %v229
        %250 = vmax.xlane.f32.xlu0 %v249
        %v251 = vpop.xlane.xlu0 %250
        %v252 = vmax.f32 %v230, %v231
        %253 = vmax.xlane.f32.xlu0 %v252
        %v254 = vpop.xlane.xlu0 %253
        %v255 = vmax.f32 %v232, %v233
        %256 = vmax.xlane.f32.xlu0 %v255
        %v257 = vpop.xlane.xlu0 %256
        %p258 = scmp.eq.s32.totalorder %s27, 0
        // Predicated region
        $region37: #{tpu_custom_call.1} parent=31 // pred_check
          %p259 = pneg %p258
        $region38: #{tpu_custom_call.1} parent=31 // pred_check_branch
          %261 = sbr.rel (%p259) target = $region40
        $region39: #{tpu_custom_call.1} parent=31 // pred_region
          %v270 = vlaneseq
          %v271 = vand.u32 %v270, 127
          %v272 = vlaneseq
          %v273 = vshrl.u32 %v272, 7
          %v274 = vsub.s32 %v271, %v273
          %v275 = vrot.slane %v236, %v274
          %v276 = vadd.s32 %v271, 4294967288
          %v277 = vlaneseq
          %v278 = vshrl.u32 %v277, 7
          %v279 = vsub.s32 %v276, %v278
          %v280 = vrot.slane %v239, %v279
          %vm281 = vcmask 130112
          %v282 = vsel %vm281, %v280, %v275
          %v283 = vadd.s32 %v271, 4294967280
          %v284 = vlaneseq
          %v285 = vshrl.u32 %v284, 7
          %v286 = vsub.s32 %v283, %v285
          %v287 = vrot.slane %v242, %v286
          %vm288 = vcmask 195712
          %v289 = vsel %vm288, %v287, %v282
          %v290 = vadd.s32 %v271, 4294967272
          %v291 = vlaneseq
          %v292 = vshrl.u32 %v291, 7
          %v293 = vsub.s32 %v290, %v292
          %v294 = vrot.slane %v245, %v293
          %vm295 = vcmask 261312
          %v296 = vsel %vm295, %v294, %v289
          %v297 = vadd.s32 %v271, 4294967264
          %v298 = vlaneseq
          %v299 = vshrl.u32 %v298, 7
          %v300 = vsub.s32 %v297, %v299
          %v301 = vrot.slane %v248, %v300
          %vm302 = vcmask 326912
          %v303 = vsel %vm302, %v301, %v296
          %v304 = vadd.s32 %v271, 4294967256
          %v305 = vlaneseq
          %v306 = vshrl.u32 %v305, 7
          %v307 = vsub.s32 %v304, %v306
          %v308 = vrot.slane %v251, %v307
          %vm309 = vcmask 392512
          %v310 = vsel %vm309, %v308, %v303
          %v311 = vadd.s32 %v271, 4294967248
          %v312 = vlaneseq
          %v313 = vshrl.u32 %v312, 7
          %v314 = vsub.s32 %v311, %v313
          %v315 = vrot.slane %v254, %v314
          %vm316 = vcmask 458112
          %v317 = vsel %vm316, %v315, %v310
          %v318 = vadd.s32 %v271, 4294967240
          %v319 = vlaneseq
          %v320 = vshrl.u32 %v319, 7
          %v321 = vsub.s32 %v318, %v320
          %v322 = vrot.slane %v257, %v321
          %vm323 = vcmask 523712
          %v324 = vsel %vm323, %v322, %v317
          %s326 = scalar_lea.vmem [#allocation2], %s26
          %vm327 = vcmask 516096
          %328 = vst.msk [vmem:[%s326] sm:$0x1] %vm327, %v324
        $region40: #{tpu_custom_call.1} parent=31 // pred_fallthru
          _
        %p329 = scmp.gt.s32.totalorder %s27, 0
        // Predicated region
        $region41: #{tpu_custom_call.1} parent=31 // pred_check
          %p330 = pneg %p329
        $region42: #{tpu_custom_call.1} parent=31 // pred_check_branch
          %332 = sbr.rel (%p330) target = $region44
        $region43: #{tpu_custom_call.1} parent=31 // pred_region
          %s333 = scalar_lea.vmem [#allocation2], %s26
          %v334 = vld [vmem:[%s333] sm:$0x1]
          %v343 = vlaneseq
          %v344 = vshrl.u32 %v343, 7
          %v345 = vsub.s32 0, %v344
          %v346 = vrot.slane %v236, %v345
          %v347 = vlaneseq
          %v348 = vshrl.u32 %v347, 7
          %v349 = vsub.s32 1, %v348
          %v350 = vrot.slane %v236, %v349
          %v351 = vlaneseq
          %v352 = vshrl.u32 %v351, 7
          %v353 = vsub.s32 2, %v352
          %v354 = vrot.slane %v236, %v353
          %v355 = vlaneseq
          %v356 = vshrl.u32 %v355, 7
          %v357 = vsub.s32 3, %v356
          %v358 = vrot.slane %v236, %v357
          %v359 = vlaneseq
          %v360 = vshrl.u32 %v359, 7
          %v361 = vsub.s32 4, %v360
          %v362 = vrot.slane %v236, %v361
          %v363 = vlaneseq
          %v364 = vshrl.u32 %v363, 7
          %v365 = vsub.s32 5, %v364
          %v366 = vrot.slane %v236, %v365
          %v367 = vlaneseq
          %v368 = vshrl.u32 %v367, 7
          %v369 = vsub.s32 6, %v368
          %v370 = vrot.slane %v236, %v369
          %v371 = vlaneseq
          %v372 = vshrl.u32 %v371, 7
          %v373 = vsub.s32 7, %v372
          %v374 = vrot.slane %v236, %v373
          %v375 = vlaneseq
          %v376 = vshrl.u32 %v375, 7
          %v377 = vsub.s32 0, %v376
          %v378 = vrot.slane %v239, %v377
          %v379 = vlaneseq
          %v380 = vshrl.u32 %v379, 7
          %v381 = vsub.s32 1, %v380
          %v382 = vrot.slane %v239, %v381
          %v383 = vlaneseq
          %v384 = vshrl.u32 %v383, 7
          %v385 = vsub.s32 2, %v384
          %v386 = vrot.slane %v239, %v385
          %v387 = vlaneseq
          %v388 = vshrl.u32 %v387, 7
          %v389 = vsub.s32 3, %v388
          %v390 = vrot.slane %v239, %v389
          %v391 = vlaneseq
          %v392 = vshrl.u32 %v391, 7
          %v393 = vsub.s32 4, %v392
          %v394 = vrot.slane %v239, %v393
          %v395 = vlaneseq
          %v396 = vshrl.u32 %v395, 7
          %v397 = vsub.s32 5, %v396
          %v398 = vrot.slane %v239, %v397
          %v399 = vlaneseq
          %v400 = vshrl.u32 %v399, 7
          %v401 = vsub.s32 6, %v400
          %v402 = vrot.slane %v239, %v401
          %v403 = vlaneseq
          %v404 = vshrl.u32 %v403, 7
          %v405 = vsub.s32 7, %v404
          %v406 = vrot.slane %v239, %v405
          %v407 = vlaneseq
          %v408 = vshrl.u32 %v407, 7
          %v409 = vsub.s32 0, %v408
          %v410 = vrot.slane %v242, %v409
          %v411 = vlaneseq
          %v412 = vshrl.u32 %v411, 7
          %v413 = vsub.s32 1, %v412
          %v414 = vrot.slane %v242, %v413
          %v415 = vlaneseq
          %v416 = vshrl.u32 %v415, 7
          %v417 = vsub.s32 2, %v416
          %v418 = vrot.slane %v242, %v417
          %v419 = vlaneseq
          %v420 = vshrl.u32 %v419, 7
          %v421 = vsub.s32 3, %v420
          %v422 = vrot.slane %v242, %v421
          %v423 = vlaneseq
          %v424 = vshrl.u32 %v423, 7
          %v425 = vsub.s32 4, %v424
          %v426 = vrot.slane %v242, %v425
          %v427 = vlaneseq
          %v428 = vshrl.u32 %v427, 7
          %v429 = vsub.s32 5, %v428
          %v430 = vrot.slane %v242, %v429
          %v431 = vlaneseq
          %v432 = vshrl.u32 %v431, 7
          %v433 = vsub.s32 6, %v432
          %v434 = vrot.slane %v242, %v433
          %v435 = vlaneseq
          %v436 = vshrl.u32 %v435, 7
          %v437 = vsub.s32 7, %v436
          %v438 = vrot.slane %v242, %v437
          %v439 = vlaneseq
          %v440 = vshrl.u32 %v439, 7
          %v441 = vsub.s32 0, %v440
          %v442 = vrot.slane %v245, %v441
          %v443 = vlaneseq
          %v444 = vshrl.u32 %v443, 7
          %v445 = vsub.s32 1, %v444
          %v446 = vrot.slane %v245, %v445
          %v447 = vlaneseq
          %v448 = vshrl.u32 %v447, 7
          %v449 = vsub.s32 2, %v448
          %v450 = vrot.slane %v245, %v449
          %v451 = vlaneseq
          %v452 = vshrl.u32 %v451, 7
          %v453 = vsub.s32 3, %v452
          %v454 = vrot.slane %v245, %v453
          %v455 = vlaneseq
          %v456 = vshrl.u32 %v455, 7
          %v457 = vsub.s32 4, %v456
          %v458 = vrot.slane %v245, %v457
          %v459 = vlaneseq
          %v460 = vshrl.u32 %v459, 7
          %v461 = vsub.s32 5, %v460
          %v462 = vrot.slane %v245, %v461
          %v463 = vlaneseq
          %v464 = vshrl.u32 %v463, 7
          %v465 = vsub.s32 6, %v464
          %v466 = vrot.slane %v245, %v465
          %v467 = vlaneseq
          %v468 = vshrl.u32 %v467, 7
          %v469 = vsub.s32 7, %v468
          %v470 = vrot.slane %v245, %v469
          %v471 = vlaneseq
          %v472 = vshrl.u32 %v471, 7
          %v473 = vsub.s32 0, %v472
          %v474 = vrot.slane %v248, %v473
          %v475 = vlaneseq
          %v476 = vshrl.u32 %v475, 7
          %v477 = vsub.s32 1, %v476
          %v478 = vrot.slane %v248, %v477
          %v479 = vlaneseq
          %v480 = vshrl.u32 %v479, 7
          %v481 = vsub.s32 2, %v480
          %v482 = vrot.slane %v248, %v481
          %v483 = vlaneseq
          %v484 = vshrl.u32 %v483, 7
          %v485 = vsub.s32 3, %v484
          %v486 = vrot.slane %v248, %v485
          %v487 = vlaneseq
          %v488 = vshrl.u32 %v487, 7
          %v489 = vsub.s32 4, %v488
          %v490 = vrot.slane %v248, %v489
          %v491 = vlaneseq
          %v492 = vshrl.u32 %v491, 7
          %v493 = vsub.s32 5, %v492
          %v494 = vrot.slane %v248, %v493
          %v495 = vlaneseq
          %v496 = vshrl.u32 %v495, 7
          %v497 = vsub.s32 6, %v496
          %v498 = vrot.slane %v248, %v497
          %v499 = vlaneseq
          %v500 = vshrl.u32 %v499, 7
          %v501 = vsub.s32 7, %v500
          %v502 = vrot.slane %v248, %v501
          %v503 = vlaneseq
          %v504 = vshrl.u32 %v503, 7
          %v505 = vsub.s32 0, %v504
          %v506 = vrot.slane %v251, %v505
          %v507 = vlaneseq
          %v508 = vshrl.u32 %v507, 7
          %v509 = vsub.s32 1, %v508
          %v510 = vrot.slane %v251, %v509
          %v511 = vlaneseq
          %v512 = vshrl.u32 %v511, 7
          %v513 = vsub.s32 2, %v512
          %v514 = vrot.slane %v251, %v513
          %v515 = vlaneseq
          %v516 = vshrl.u32 %v515, 7
          %v517 = vsub.s32 3, %v516
          %v518 = vrot.slane %v251, %v517
          %v519 = vlaneseq
          %v520 = vshrl.u32 %v519, 7
          %v521 = vsub.s32 4, %v520
          %v522 = vrot.slane %v251, %v521
          %v523 = vlaneseq
          %v524 = vshrl.u32 %v523, 7
          %v525 = vsub.s32 5, %v524
          %v526 = vrot.slane %v251, %v525
          %v527 = vlaneseq
          %v528 = vshrl.u32 %v527, 7
          %v529 = vsub.s32 6, %v528
          %v530 = vrot.slane %v251, %v529
          %v531 = vlaneseq
          %v532 = vshrl.u32 %v531, 7
          %v533 = vsub.s32 7, %v532
          %v534 = vrot.slane %v251, %v533
          %v535 = vlaneseq
          %v536 = vshrl.u32 %v535, 7
          %v537 = vsub.s32 0, %v536
          %v538 = vrot.slane %v254, %v537
          %v539 = vlaneseq
          %v540 = vshrl.u32 %v539, 7
          %v541 = vsub.s32 1, %v540
          %v542 = vrot.slane %v254, %v541
          %v543 = vlaneseq
          %v544 = vshrl.u32 %v543, 7
          %v545 = vsub.s32 2, %v544
          %v546 = vrot.slane %v254, %v545
          %v547 = vlaneseq
          %v548 = vshrl.u32 %v547, 7
          %v549 = vsub.s32 3, %v548
          %v550 = vrot.slane %v254, %v549
          %v551 = vlaneseq
          %v552 = vshrl.u32 %v551, 7
          %v553 = vsub.s32 4, %v552
          %v554 = vrot.slane %v254, %v553
          %v555 = vlaneseq
          %v556 = vshrl.u32 %v555, 7
          %v557 = vsub.s32 5, %v556
          %v558 = vrot.slane %v254, %v557
          %v559 = vlaneseq
          %v560 = vshrl.u32 %v559, 7
          %v561 = vsub.s32 6, %v560
          %v562 = vrot.slane %v254, %v561
          %v563 = vlaneseq
          %v564 = vshrl.u32 %v563, 7
          %v565 = vsub.s32 7, %v564
          %v566 = vrot.slane %v254, %v565
          %v567 = vlaneseq
          %v568 = vshrl.u32 %v567, 7
          %v569 = vsub.s32 0, %v568
          %v570 = vrot.slane %v257, %v569
          %v571 = vlaneseq
          %v572 = vshrl.u32 %v571, 7
          %v573 = vsub.s32 1, %v572
          %v574 = vrot.slane %v257, %v573
          %v575 = vlaneseq
          %v576 = vshrl.u32 %v575, 7
          %v577 = vsub.s32 2, %v576
          %v578 = vrot.slane %v257, %v577
          %v579 = vlaneseq
          %v580 = vshrl.u32 %v579, 7
          %v581 = vsub.s32 3, %v580
          %v582 = vrot.slane %v257, %v581
          %v583 = vlaneseq
          %v584 = vshrl.u32 %v583, 7
          %v585 = vsub.s32 4, %v584
          %v586 = vrot.slane %v257, %v585
          %v587 = vlaneseq
          %v588 = vshrl.u32 %v587, 7
          %v589 = vsub.s32 5, %v588
          %v590 = vrot.slane %v257, %v589
          %v591 = vlaneseq
          %v592 = vshrl.u32 %v591, 7
          %v593 = vsub.s32 6, %v592
          %v594 = vrot.slane %v257, %v593
          %v595 = vlaneseq
          %v596 = vshrl.u32 %v595, 7
          %v597 = vsub.s32 7, %v596
          %v598 = vrot.slane %v257, %v597
          %v599 = vcombine.low %v346, %v350
          %v600 = vcombine.low %v354, %v358
          %v601 = vcombine.low %v362, %v366
          %v602 = vcombine.low %v370, %v374
          %v604 = vunpack.c.l.s4 1966171168
          %v605 = vunpack.c.0.s8 %v604
          %v606 = vlaneseq
          %v607 = vshrl.u32 %v606, 7
          %v608 = vsub.s32 %v605, %v607
          %v609 = vrot.slane %v599, %v608
          %v611 = vunpack.c.l.s4 1966171168
          %v612 = vunpack.c.0.s8 %v611
          %v613 = vlaneseq
          %v614 = vshrl.u32 %v613, 7
          %v615 = vsub.s32 %v612, %v614
          %v616 = vrot.slane %v600, %v615
          %v618 = vunpack.c.l.s4 1966171168
          %v619 = vunpack.c.0.s8 %v618
          %v620 = vlaneseq
          %v621 = vshrl.u32 %v620, 7
          %v622 = vsub.s32 %v619, %v621
          %v623 = vrot.slane %v601, %v622
          %v625 = vunpack.c.l.s4 1966171168
          %v626 = vunpack.c.0.s8 %v625
          %v627 = vlaneseq
          %v628 = vshrl.u32 %v627, 7
          %v629 = vsub.s32 %v626, %v628
          %v630 = vrot.slane %v602, %v629
          %v631 = vcombine.low %v609, %v616
          %v632 = vcombine.low %v623, %v630
          %v634 = vunpack.c.l.s4 1966171168
          %v635 = vunpack.c.0.s8 %v634
          %v636 = vlaneseq
          %v637 = vshrl.u32 %v636, 7
          %v638 = vsub.s32 %v635, %v637
          %v639 = vrot.slane %v631, %v638
          %v641 = vunpack.c.l.s4 1966171168
          %v642 = vunpack.c.0.s8 %v641
          %v643 = vlaneseq
          %v644 = vshrl.u32 %v643, 7
          %v645 = vsub.s32 %v642, %v644
          %v646 = vrot.slane %v632, %v645
          %v647 = vcombine.low %v639, %v646
          %v648 = vcombine.low %v378, %v382
          %v649 = vcombine.low %v386, %v390
          %v650 = vcombine.low %v394, %v398
          %v651 = vcombine.low %v402, %v406
          %v653 = vunpack.c.l.s4 1966171168
          %v654 = vunpack.c.0.s8 %v653
          %v655 = vlaneseq
          %v656 = vshrl.u32 %v655, 7
          %v657 = vsub.s32 %v654, %v656
          %v658 = vrot.slane %v648, %v657
          %v660 = vunpack.c.l.s4 1966171168
          %v661 = vunpack.c.0.s8 %v660
          %v662 = vlaneseq
          %v663 = vshrl.u32 %v662, 7
          %v664 = vsub.s32 %v661, %v663
          %v665 = vrot.slane %v649, %v664
          %v667 = vunpack.c.l.s4 1966171168
          %v668 = vunpack.c.0.s8 %v667
          %v669 = vlaneseq
          %v670 = vshrl.u32 %v669, 7
          %v671 = vsub.s32 %v668, %v670
          %v672 = vrot.slane %v650, %v671
          %v674 = vunpack.c.l.s4 1966171168
          %v675 = vunpack.c.0.s8 %v674
          %v676 = vlaneseq
          %v677 = vshrl.u32 %v676, 7
          %v678 = vsub.s32 %v675, %v677
          %v679 = vrot.slane %v651, %v678
          %v680 = vcombine.low %v658, %v665
          %v681 = vcombine.low %v672, %v679
          %v683 = vunpack.c.l.s4 1966171168
          %v684 = vunpack.c.0.s8 %v683
          %v685 = vlaneseq
          %v686 = vshrl.u32 %v685, 7
          %v687 = vsub.s32 %v684, %v686
          %v688 = vrot.slane %v680, %v687
          %v690 = vunpack.c.l.s4 1966171168
          %v691 = vunpack.c.0.s8 %v690
          %v692 = vlaneseq
          %v693 = vshrl.u32 %v692, 7
          %v694 = vsub.s32 %v691, %v693
          %v695 = vrot.slane %v681, %v694
          %v696 = vcombine.low %v688, %v695
          %v697 = vcombine.low %v410, %v414
          %v698 = vcombine.low %v418, %v422
          %v699 = vcombine.low %v426, %v430
          %v700 = vcombine.low %v434, %v438
          %v702 = vunpack.c.l.s4 1966171168
          %v703 = vunpack.c.0.s8 %v702
          %v704 = vlaneseq
          %v705 = vshrl.u32 %v704, 7
          %v706 = vsub.s32 %v703, %v705
          %v707 = vrot.slane %v697, %v706
          %v709 = vunpack.c.l.s4 1966171168
          %v710 = vunpack.c.0.s8 %v709
          %v711 = vlaneseq
          %v712 = vshrl.u32 %v711, 7
          %v713 = vsub.s32 %v710, %v712
          %v714 = vrot.slane %v698, %v713
          %v716 = vunpack.c.l.s4 1966171168
          %v717 = vunpack.c.0.s8 %v716
          %v718 = vlaneseq
          %v719 = vshrl.u32 %v718, 7
          %v720 = vsub.s32 %v717, %v719
          %v721 = vrot.slane %v699, %v720
          %v723 = vunpack.c.l.s4 1966171168
          %v724 = vunpack.c.0.s8 %v723
          %v725 = vlaneseq
          %v726 = vshrl.u32 %v725, 7
          %v727 = vsub.s32 %v724, %v726
          %v728 = vrot.slane %v700, %v727
          %v729 = vcombine.low %v707, %v714
          %v730 = vcombine.low %v721, %v728
          %v732 = vunpack.c.l.s4 1966171168
          %v733 = vunpack.c.0.s8 %v732
          %v734 = vlaneseq
          %v735 = vshrl.u32 %v734, 7
          %v736 = vsub.s32 %v733, %v735
          %v737 = vrot.slane %v729, %v736
          %v739 = vunpack.c.l.s4 1966171168
          %v740 = vunpack.c.0.s8 %v739
          %v741 = vlaneseq
          %v742 = vshrl.u32 %v741, 7
          %v743 = vsub.s32 %v740, %v742
          %v744 = vrot.slane %v730, %v743
          %v745 = vcombine.low %v737, %v744
          %v746 = vcombine.low %v442, %v446
          %v747 = vcombine.low %v450, %v454
          %v748 = vcombine.low %v458, %v462
          %v749 = vcombine.low %v466, %v470
          %v751 = vunpack.c.l.s4 1966171168
          %v752 = vunpack.c.0.s8 %v751
          %v753 = vlaneseq
          %v754 = vshrl.u32 %v753, 7
          %v755 = vsub.s32 %v752, %v754
          %v756 = vrot.slane %v746, %v755
          %v758 = vunpack.c.l.s4 1966171168
          %v759 = vunpack.c.0.s8 %v758
          %v760 = vlaneseq
          %v761 = vshrl.u32 %v760, 7
          %v762 = vsub.s32 %v759, %v761
          %v763 = vrot.slane %v747, %v762
          %v765 = vunpack.c.l.s4 1966171168
          %v766 = vunpack.c.0.s8 %v765
          %v767 = vlaneseq
          %v768 = vshrl.u32 %v767, 7
          %v769 = vsub.s32 %v766, %v768
          %v770 = vrot.slane %v748, %v769
          %v772 = vunpack.c.l.s4 1966171168
          %v773 = vunpack.c.0.s8 %v772
          %v774 = vlaneseq
          %v775 = vshrl.u32 %v774, 7
          %v776 = vsub.s32 %v773, %v775
          %v777 = vrot.slane %v749, %v776
          %v778 = vcombine.low %v756, %v763
          %v779 = vcombine.low %v770, %v777
          %v781 = vunpack.c.l.s4 1966171168
          %v782 = vunpack.c.0.s8 %v781
          %v783 = vlaneseq
          %v784 = vshrl.u32 %v783, 7
          %v785 = vsub.s32 %v782, %v784
          %v786 = vrot.slane %v778, %v785
          %v788 = vunpack.c.l.s4 1966171168
          %v789 = vunpack.c.0.s8 %v788
          %v790 = vlaneseq
          %v791 = vshrl.u32 %v790, 7
          %v792 = vsub.s32 %v789, %v791
          %v793 = vrot.slane %v779, %v792
          %v794 = vcombine.low %v786, %v793
          %v795 = vcombine.low %v474, %v478
          %v796 = vcombine.low %v482, %v486
          %v797 = vcombine.low %v490, %v494
          %v798 = vcombine.low %v498, %v502
          %v800 = vunpack.c.l.s4 1966171168
          %v801 = vunpack.c.0.s8 %v800
          %v802 = vlaneseq
          %v803 = vshrl.u32 %v802, 7
          %v804 = vsub.s32 %v801, %v803
          %v805 = vrot.slane %v795, %v804
          %v807 = vunpack.c.l.s4 1966171168
          %v808 = vunpack.c.0.s8 %v807
          %v809 = vlaneseq
          %v810 = vshrl.u32 %v809, 7
          %v811 = vsub.s32 %v808, %v810
          %v812 = vrot.slane %v796, %v811
          %v814 = vunpack.c.l.s4 1966171168
          %v815 = vunpack.c.0.s8 %v814
          %v816 = vlaneseq
          %v817 = vshrl.u32 %v816, 7
          %v818 = vsub.s32 %v815, %v817
          %v819 = vrot.slane %v797, %v818
          %v821 = vunpack.c.l.s4 1966171168
          %v822 = vunpack.c.0.s8 %v821
          %v823 = vlaneseq
          %v824 = vshrl.u32 %v823, 7
          %v825 = vsub.s32 %v822, %v824
          %v826 = vrot.slane %v798, %v825
          %v827 = vcombine.low %v805, %v812
          %v828 = vcombine.low %v819, %v826
          %v830 = vunpack.c.l.s4 1966171168
          %v831 = vunpack.c.0.s8 %v830
          %v832 = vlaneseq
          %v833 = vshrl.u32 %v832, 7
          %v834 = vsub.s32 %v831, %v833
          %v835 = vrot.slane %v827, %v834
          %v837 = vunpack.c.l.s4 1966171168
          %v838 = vunpack.c.0.s8 %v837
          %v839 = vlaneseq
          %v840 = vshrl.u32 %v839, 7
          %v841 = vsub.s32 %v838, %v840
          %v842 = vrot.slane %v828, %v841
          %v843 = vcombine.low %v835, %v842
          %v844 = vcombine.low %v506, %v510
          %v845 = vcombine.low %v514, %v518
          %v846 = vcombine.low %v522, %v526
          %v847 = vcombine.low %v530, %v534
          %v849 = vunpack.c.l.s4 1966171168
          %v850 = vunpack.c.0.s8 %v849
          %v851 = vlaneseq
          %v852 = vshrl.u32 %v851, 7
          %v853 = vsub.s32 %v850, %v852
          %v854 = vrot.slane %v844, %v853
          %v856 = vunpack.c.l.s4 1966171168
          %v857 = vunpack.c.0.s8 %v856
          %v858 = vlaneseq
          %v859 = vshrl.u32 %v858, 7
          %v860 = vsub.s32 %v857, %v859
          %v861 = vrot.slane %v845, %v860
          %v863 = vunpack.c.l.s4 1966171168
          %v864 = vunpack.c.0.s8 %v863
          %v865 = vlaneseq
          %v866 = vshrl.u32 %v865, 7
          %v867 = vsub.s32 %v864, %v866
          %v868 = vrot.slane %v846, %v867
          %v870 = vunpack.c.l.s4 1966171168
          %v871 = vunpack.c.0.s8 %v870
          %v872 = vlaneseq
          %v873 = vshrl.u32 %v872, 7
          %v874 = vsub.s32 %v871, %v873
          %v875 = vrot.slane %v847, %v874
          %v876 = vcombine.low %v854, %v861
          %v877 = vcombine.low %v868, %v875
          %v879 = vunpack.c.l.s4 1966171168
          %v880 = vunpack.c.0.s8 %v879
          %v881 = vlaneseq
          %v882 = vshrl.u32 %v881, 7
          %v883 = vsub.s32 %v880, %v882
          %v884 = vrot.slane %v876, %v883
          %v886 = vunpack.c.l.s4 1966171168
          %v887 = vunpack.c.0.s8 %v886
          %v888 = vlaneseq
          %v889 = vshrl.u32 %v888, 7
          %v890 = vsub.s32 %v887, %v889
          %v891 = vrot.slane %v877, %v890
          %v892 = vcombine.low %v884, %v891
          %v893 = vcombine.low %v538, %v542
          %v894 = vcombine.low %v546, %v550
          %v895 = vcombine.low %v554, %v558
          %v896 = vcombine.low %v562, %v566
          %v898 = vunpack.c.l.s4 1966171168
          %v899 = vunpack.c.0.s8 %v898
          %v900 = vlaneseq
          %v901 = vshrl.u32 %v900, 7
          %v902 = vsub.s32 %v899, %v901
          %v903 = vrot.slane %v893, %v902
          %v905 = vunpack.c.l.s4 1966171168
          %v906 = vunpack.c.0.s8 %v905
          %v907 = vlaneseq
          %v908 = vshrl.u32 %v907, 7
          %v909 = vsub.s32 %v906, %v908
          %v910 = vrot.slane %v894, %v909
          %v912 = vunpack.c.l.s4 1966171168
          %v913 = vunpack.c.0.s8 %v912
          %v914 = vlaneseq
          %v915 = vshrl.u32 %v914, 7
          %v916 = vsub.s32 %v913, %v915
          %v917 = vrot.slane %v895, %v916
          %v919 = vunpack.c.l.s4 1966171168
          %v920 = vunpack.c.0.s8 %v919
          %v921 = vlaneseq
          %v922 = vshrl.u32 %v921, 7
          %v923 = vsub.s32 %v920, %v922
          %v924 = vrot.slane %v896, %v923
          %v925 = vcombine.low %v903, %v910
          %v926 = vcombine.low %v917, %v924
          %v928 = vunpack.c.l.s4 1966171168
          %v929 = vunpack.c.0.s8 %v928
          %v930 = vlaneseq
          %v931 = vshrl.u32 %v930, 7
          %v932 = vsub.s32 %v929, %v931
          %v933 = vrot.slane %v925, %v932
          %v935 = vunpack.c.l.s4 1966171168
          %v936 = vunpack.c.0.s8 %v935
          %v937 = vlaneseq
          %v938 = vshrl.u32 %v937, 7
          %v939 = vsub.s32 %v936, %v938
          %v940 = vrot.slane %v926, %v939
          %v941 = vcombine.low %v933, %v940
          %v942 = vcombine.low %v570, %v574
          %v943 = vcombine.low %v578, %v582
          %v944 = vcombine.low %v586, %v590
          %v945 = vcombine.low %v594, %v598
          %v947 = vunpack.c.l.s4 1966171168
          %v948 = vunpack.c.0.s8 %v947
          %v949 = vlaneseq
          %v950 = vshrl.u32 %v949, 7
          %v951 = vsub.s32 %v948, %v950
          %v952 = vrot.slane %v942, %v951
          %v954 = vunpack.c.l.s4 1966171168
          %v955 = vunpack.c.0.s8 %v954
          %v956 = vlaneseq
          %v957 = vshrl.u32 %v956, 7
          %v958 = vsub.s32 %v955, %v957
          %v959 = vrot.slane %v943, %v958
          %v961 = vunpack.c.l.s4 1966171168
          %v962 = vunpack.c.0.s8 %v961
          %v963 = vlaneseq
          %v964 = vshrl.u32 %v963, 7
          %v965 = vsub.s32 %v962, %v964
          %v966 = vrot.slane %v944, %v965
          %v968 = vunpack.c.l.s4 1966171168
          %v969 = vunpack.c.0.s8 %v968
          %v970 = vlaneseq
          %v971 = vshrl.u32 %v970, 7
          %v972 = vsub.s32 %v969, %v971
          %v973 = vrot.slane %v945, %v972
          %v974 = vcombine.low %v952, %v959
          %v975 = vcombine.low %v966, %v973
          %v977 = vunpack.c.l.s4 1966171168
          %v978 = vunpack.c.0.s8 %v977
          %v979 = vlaneseq
          %v980 = vshrl.u32 %v979, 7
          %v981 = vsub.s32 %v978, %v980
          %v982 = vrot.slane %v974, %v981
          %v984 = vunpack.c.l.s4 1966171168
          %v985 = vunpack.c.0.s8 %v984
          %v986 = vlaneseq
          %v987 = vshrl.u32 %v986, 7
          %v988 = vsub.s32 %v985, %v987
          %v989 = vrot.slane %v975, %v988
          %v990 = vcombine.low %v982, %v989
          %991 = vset.pattern.permute.xlu0 0
          %992 = vperm.xlu0 %991, %v647
          %v993 = vpop.permute.xlu0 %992
          %994 = vset.pattern.permute.xlu0 0
          %995 = vperm.xlu0 %994, %v696
          %v996 = vpop.permute.xlu0 %995
          %997 = vset.pattern.permute.xlu0 0
          %998 = vperm.xlu0 %997, %v745
          %v999 = vpop.permute.xlu0 %998
          %1000 = vset.pattern.permute.xlu0 0
          %1001 = vperm.xlu0 %1000, %v794
          %v1002 = vpop.permute.xlu0 %1001
          %1003 = vset.pattern.permute.xlu0 0
          %1004 = vperm.xlu0 %1003, %v843
          %v1005 = vpop.permute.xlu0 %1004
          %1006 = vset.pattern.permute.xlu0 0
          %1007 = vperm.xlu0 %1006, %v892
          %v1008 = vpop.permute.xlu0 %1007
          %1009 = vset.pattern.permute.xlu0 0
          %1010 = vperm.xlu0 %1009, %v941
          %v1011 = vpop.permute.xlu0 %1010
          %1012 = vset.pattern.permute.xlu0 0
          %1013 = vperm.xlu0 %1012, %v990
          %v1014 = vpop.permute.xlu0 %1013
          %v1015 = vlaneseq
          %v1016 = vand.u32 %v1015, 127
          %v1017 = vlaneseq
          %v1018 = vshrl.u32 %v1017, 7
          %v1019 = vsub.s32 %v1016, %v1018
          %v1020 = vrot.slane %v993, %v1019
          %v1021 = vadd.s32 %v1016, 4294967288
          %v1022 = vlaneseq
          %v1023 = vshrl.u32 %v1022, 7
          %v1024 = vsub.s32 %v1021, %v1023
          %v1025 = vrot.slane %v996, %v1024
          %vm1026 = vcmask 130112
          %v1027 = vsel %vm1026, %v1025, %v1020
          %v1028 = vadd.s32 %v1016, 4294967280
          %v1029 = vlaneseq
          %v1030 = vshrl.u32 %v1029, 7
          %v1031 = vsub.s32 %v1028, %v1030
          %v1032 = vrot.slane %v999, %v1031
          %vm1033 = vcmask 195712
          %v1034 = vsel %vm1033, %v1032, %v1027
          %v1035 = vadd.s32 %v1016, 4294967272
          %v1036 = vlaneseq
          %v1037 = vshrl.u32 %v1036, 7
          %v1038 = vsub.s32 %v1035, %v1037
          %v1039 = vrot.slane %v1002, %v1038
          %vm1040 = vcmask 261312
          %v1041 = vsel %vm1040, %v1039, %v1034
          %v1042 = vadd.s32 %v1016, 4294967264
          %v1043 = vlaneseq
          %v1044 = vshrl.u32 %v1043, 7
          %v1045 = vsub.s32 %v1042, %v1044
          %v1046 = vrot.slane %v1005, %v1045
          %vm1047 = vcmask 326912
          %v1048 = vsel %vm1047, %v1046, %v1041
          %v1049 = vadd.s32 %v1016, 4294967256
          %v1050 = vlaneseq
          %v1051 = vshrl.u32 %v1050, 7
          %v1052 = vsub.s32 %v1049, %v1051
          %v1053 = vrot.slane %v1008, %v1052
          %vm1054 = vcmask 392512
          %v1055 = vsel %vm1054, %v1053, %v1048
          %v1056 = vadd.s32 %v1016, 4294967248
          %v1057 = vlaneseq
          %v1058 = vshrl.u32 %v1057, 7
          %v1059 = vsub.s32 %v1056, %v1058
          %v1060 = vrot.slane %v1011, %v1059
          %vm1061 = vcmask 458112
          %v1062 = vsel %vm1061, %v1060, %v1055
          %v1063 = vadd.s32 %v1016, 4294967240
          %v1064 = vlaneseq
          %v1065 = vshrl.u32 %v1064, 7
          %v1066 = vsub.s32 %v1063, %v1065
          %v1067 = vrot.slane %v1014, %v1066
          %vm1068 = vcmask 523712
          %v1069 = vsel %vm1068, %v1067, %v1062
          %v1071 = vunpack.c.l.s4 1966171168
          %v1072 = vunpack.c.0.s8 %v1071
          %v1073 = vlaneseq
          %v1074 = vshrl.u32 %v1073, 7
          %v1075 = vsub.s32 %v1072, %v1074
          %v1076 = vrot.slane %v1069, %v1075
          %v1078 = vunpack.c.l.s4 1966171168
          %v1079 = vunpack.c.0.s8 %v1078
          %v1080 = vlaneseq
          %v1081 = vshrl.u32 %v1080, 7
          %v1082 = vsub.s32 %v1079, %v1081
          %v1083 = vrot.slane %v1076, %v1082
          %v1085 = vmax.f32 %v334, %v1083
          %vm1086 = vcmask 516096
          %1087 = vst.msk [vmem:[%s333] sm:$0x1] %vm1086, %v1085
        $region44: #{tpu_custom_call.1} parent=31 // pred_fallthru
          _
        %p1088 = scmp.eq.s32.totalorder %s26, 0
        %p1089 = pnand %p1088, %p258
        %p1090 = pneg %p1089
        // Predicated region
        $region45: #{tpu_custom_call.1} parent=31 // pred_check
          _
        $region46: #{tpu_custom_call.1} parent=31 // pred_check_branch
          %1092 = sbr.rel (%p1089) target = $region48
        $region47: #{tpu_custom_call.1} parent=31 // pred_region
          %v1093 = vld [vmem:[#allocation2] sm:$0x1]
          %v1094 = vld [vmem:[%s1] sm:$0xff]
          %v1095 = vld [vmem:[%s1 + $0x8] sm:$0xff]
          %v1096 = vld [vmem:[%s1 + $0x10] sm:$0xff]
          %v1097 = vld [vmem:[%s1 + $0x18] sm:$0xff]
          %v1098 = vld [vmem:[%s1 + $0x20] sm:$0xff]
          %v1099 = vld [vmem:[%s1 + $0x28] sm:$0xff]
          %v1100 = vld [vmem:[%s1 + $0x30] sm:$0xff]
          %v1101 = vld [vmem:[%s1 + $0x38] sm:$0xff]
          %vm1102 = vcmask 523264
          %v1104 = vsel %vm1102, %v1093, 0
          %1106 = vmatprep.subr.mxu0 0.0
          %1107 = vmatpush1.msra.mxu0 %v1094
          %1108 = vmatprep.subr.mxu0 0.0
          %1109 = vmatpush1.msra.mxu0 %v1095
          %1110 = vmatprep.subr.mxu0 0.0
          %1111 = vmatpush1.msra.mxu0 %v1096
          %1112 = vmatprep.subr.mxu0 0.0
          %1113 = vmatpush1.msra.mxu0 %v1097
          %1114 = vmatprep.subr.mxu0 0.0
          %1115 = vmatpush1.msra.mxu0 %v1098
          %1116 = vmatprep.subr.mxu0 0.0
          %1117 = vmatpush1.msra.mxu0 %v1099
          %1118 = vmatprep.subr.mxu0 0.0
          %1119 = vmatpush1.msra.mxu0 %v1100
          %1120 = vmatprep.subr.mxu0 0.0
          %1121 = vmatpush1.msra.mxu0 %v1101
          %1122 = vmatprep.subr.mxu0 0.0
          %1123 = vmatpush1.msra.mxu0 0.0
          %1124 = vmatprep.subr.mxu0 0.0
          %1125 = vmatpush1.msra.mxu0 0.0
          %1126 = vmatprep.subr.mxu0 0.0
          %1127 = vmatpush1.msra.mxu0 0.0
          %1128 = vmatprep.subr.mxu0 0.0
          %1129 = vmatpush1.msra.mxu0 0.0
          %1130 = vmatprep.subr.mxu0 0.0
          %1131 = vmatpush1.msra.mxu0 0.0
          %1132 = vmatprep.subr.mxu0 0.0
          %1133 = vmatpush1.msra.mxu0 0.0
          %1134 = vmatprep.subr.mxu0 0.0
          %1135 = vmatpush1.msra.mxu0 0.0
          %1136 = vmatprep.subr.mxu0 0.0
          %1137 = vmatpush1.msra.mxu0 0.0
          %1138 = vmatprep.subr.mxu0 0.0
          %1139 = vmatpush1.msra.mxu0 0.0
          %1140 = vmatprep.subr.mxu0 0.0
          %1141 = vmatpush1.msra.mxu0 0.0
          %1142 = vmatprep.subr.mxu0 0.0
          %1143 = vmatpush1.msra.mxu0 0.0
          %1144 = vmatprep.subr.mxu0 0.0
          %1145 = vmatpush1.msra.mxu0 0.0
          %1146 = vmatprep.subr.mxu0 0.0
          %1147 = vmatpush1.msra.mxu0 0.0
          %1148 = vmatprep.subr.mxu0 0.0
          %1149 = vmatpush1.msra.mxu0 0.0
          %1150 = vmatprep.subr.mxu0 0.0
          %1151 = vmatpush1.msra.mxu0 0.0
          %1152 = vmatprep.subr.mxu0 0.0
          %1153 = vmatpush1.msra.mxu0 0.0
          %1154 = vmatprep.subr.mxu0 0.0
          %1155 = vmatpush1.msra.mxu0 0.0
          %1156 = vmatprep.subr.mxu0 0.0
          %1157 = vmatpush1.msra.mxu0 0.0
          %1158 = vmatprep.subr.mxu0 0.0
          %1159 = vmatpush1.msra.mxu0 0.0
          %1160 = vmatprep.subr.mxu0 0.0
          %1161 = vmatpush1.msra.mxu0 0.0
          %1162 = vmatprep.subr.mxu0 0.0
          %1163 = vmatpush1.msra.mxu0 0.0
          %1164 = vmatprep.subr.mxu0 0.0
          %1165 = vmatpush1.msra.mxu0 0.0
          %1166 = vmatprep.subr.mxu0 0.0
          %1167 = vmatpush1.msra.mxu0 0.0
          %1168 = vmatprep.subr.mxu0 0.0
          %1169 = vmatpush1.msra.mxu0 0.0
          %1170 = vmatprep.mubr.f32.mxu0 0.0
          %1171 = vmatmul.mubr.f32.gmra.mrb[0].mxu0 %v1104
          %v1172 = vpop.f32.mrb[0].mxu0
          %v1173 = vadd.f32 0.0, %v1172
          %v1174 = vpop.f32.mrb[0].mxu0
          %1175 = vdwg.mxu0
          %v1176 = vmax.f32 %v1173, 0.0
          %v1177 = vld [vmem:[%s2] sm:$0xf]
          %vm1178 = vcmask 31744
          %v1180 = vsel %vm1178, %v1176, 0
          %vm1182 = vcmask 1043456
          %v1184 = vsel %vm1182, %v1177, 0
          %1186 = vmatprep.subr.mxu0 0.0
          %1187 = vmatpush1.msra.mxu0 %v1184
          %1188 = vmatprep.subr.mxu0 0.0
          %1189 = vmatpush1.msra.mxu0 0.0
          %1190 = vmatprep.subr.mxu0 0.0
          %1191 = vmatpush1.msra.mxu0 0.0
          %1192 = vmatprep.subr.mxu0 0.0
          %1193 = vmatpush1.msra.mxu0 0.0
          %1194 = vmatprep.subr.mxu0 0.0
          %1195 = vmatpush1.msra.mxu0 0.0
          %1196 = vmatprep.subr.mxu0 0.0
          %1197 = vmatpush1.msra.mxu0 0.0
          %1198 = vmatprep.subr.mxu0 0.0
          %1199 = vmatpush1.msra.mxu0 0.0
          %1200 = vmatprep.subr.mxu0 0.0
          %1201 = vmatpush1.msra.mxu0 0.0
          %1202 = vmatprep.subr.mxu0 0.0
          %1203 = vmatpush1.msra.mxu0 0.0
          %1204 = vmatprep.subr.mxu0 0.0
          %1205 = vmatpush1.msra.mxu0 0.0
          %1206 = vmatprep.subr.mxu0 0.0
          %1207 = vmatpush1.msra.mxu0 0.0
          %1208 = vmatprep.subr.mxu0 0.0
          %1209 = vmatpush1.msra.mxu0 0.0
          %1210 = vmatprep.subr.mxu0 0.0
          %1211 = vmatpush1.msra.mxu0 0.0
          %1212 = vmatprep.subr.mxu0 0.0
          %1213 = vmatpush1.msra.mxu0 0.0
          %1214 = vmatprep.subr.mxu0 0.0
          %1215 = vmatpush1.msra.mxu0 0.0
          %1216 = vmatprep.subr.mxu0 0.0
          %1217 = vmatpush1.msra.mxu0 0.0
          %1218 = vmatprep.subr.mxu0 0.0
          %1219 = vmatpush1.msra.mxu0 0.0
          %1220 = vmatprep.subr.mxu0 0.0
          %1221 = vmatpush1.msra.mxu0 0.0
          %1222 = vmatprep.subr.mxu0 0.0
          %1223 = vmatpush1.msra.mxu0 0.0
          %1224 = vmatprep.subr.mxu0 0.0
          %1225 = vmatpush1.msra.mxu0 0.0
          %1226 = vmatprep.subr.mxu0 0.0
          %1227 = vmatpush1.msra.mxu0 0.0
          %1228 = vmatprep.subr.mxu0 0.0
          %1229 = vmatpush1.msra.mxu0 0.0
          %1230 = vmatprep.subr.mxu0 0.0
          %1231 = vmatpush1.msra.mxu0 0.0
          %1232 = vmatprep.subr.mxu0 0.0
          %1233 = vmatpush1.msra.mxu0 0.0
          %1234 = vmatprep.subr.mxu0 0.0
          %1235 = vmatpush1.msra.mxu0 0.0
          %1236 = vmatprep.subr.mxu0 0.0
          %1237 = vmatpush1.msra.mxu0 0.0
          %1238 = vmatprep.subr.mxu0 0.0
          %1239 = vmatpush1.msra.mxu0 0.0
          %1240 = vmatprep.subr.mxu0 0.0
          %1241 = vmatpush1.msra.mxu0 0.0
          %1242 = vmatprep.subr.mxu0 0.0
          %1243 = vmatpush1.msra.mxu0 0.0
          %1244 = vmatprep.subr.mxu0 0.0
          %1245 = vmatpush1.msra.mxu0 0.0
          %1246 = vmatprep.subr.mxu0 0.0
          %1247 = vmatpush1.msra.mxu0 0.0
          %1248 = vmatprep.subr.mxu0 0.0
          %1249 = vmatpush1.msra.mxu0 0.0
          %1250 = vmatprep.mubr.f32.mxu0 0.0
          %1251 = vmatmul.mubr.f32.gmra.mrb[0].mxu0 %v1180
          %v1252 = vpop.f32.mrb[0].mxu0
          %v1253 = vadd.f32 0.0, %v1252
          %v1254 = vpop.f32.mrb[0].mxu0
          %1255 = vdwg.mxu0
          %v1256 = vsub.f32 0.0, %v1253
          %v1257 = vmul.f32 %v1256, 1.442695
          %v1258 = vpow.pop %v1257
          %v1259 = vadd.f32 %v1258, 1.0
          %v1260 = vrcp.pop %v1259
          %v1261 = vmul.f32 1.0, %v1260
          %vm1262 = vcmask 516096
          %1263 = vst.msk [vmem:[%s215] sm:$0x1] %vm1262, %v1261
        $region48: #{tpu_custom_call.1} parent=31 // pred_fallthru
          _
        %s1264 = sand.u32 %s119, 1
        %s1265 = scalar_lea.sflag [#allocation5], %s1264
        %s1266 = sand.u32 %s119, 1
        %s1267 = scalar_lea.vmem [#allocation6], %s1266
        // Predicated region
        $region49: #{tpu_custom_call.1} parent=31 // pred_check
          %p1268 = pneg %p129
        $region50: #{tpu_custom_call.1} parent=31 // pred_check_branch
          %1270 = sbr.rel (%p1268) target = $region52
        $region51: #{tpu_custom_call.1} parent=31 // pred_region
          %s1272 = ssub.s32 16, 16
          %1273 = vsyncadd %s1265, %s1272
          %s1274 = smul.addr %s25, 16
          %s1275 = scalar_lea.hbm %s3, %s1274
          %s1277 = sshll.u32 %s1267, 4
          %s1278 = int_to_ptr.vmem [resolvable:$true] %s1277
          %1280 = dma.vmem_to_hbm [thread:$0]  %s1278, 16, %s1275, %s1265
        $region52: #{tpu_custom_call.1} parent=31 // pred_fallthru
          _
      $region32: #{tpu_custom_call.1} parent=5 // pred_fallthru
        _
      %p1281 = scmp.le.s32.totalorder 2, %s15
      // Predicated region
      $region53: #{tpu_custom_call.1} parent=5 // pred_check
        %p1282 = pneg %p1281
      $region54: #{tpu_custom_call.1} parent=5 // pred_check_branch
        %1284 = sbr.rel (%p1282) target = $region56
      $region55: #{tpu_custom_call.1} parent=5 // pred_region
        %s1285 = ssub.s32 %s15, 2
        // Predicated region
        $region57: #{tpu_custom_call.1} parent=55 // pred_check
          %p1286 = pneg %p135
        $region58: #{tpu_custom_call.1} parent=55 // pred_check_branch
          %1288 = sbr.rel (%p1286) target = $region60
        $region59: #{tpu_custom_call.1} parent=55 // pred_region
          %s1289 = sand.u32 %s120, 1
          %s1290 = scalar_lea.sflag [#allocation5], %s1289
          %s1291 = sand.u32 %s120, 1
          %s1292 = scalar_lea.vmem [#allocation6], %s1291
          %1293 = dma.done %s1290, 16
        $region60: #{tpu_custom_call.1} parent=55 // pred_fallthru
          _
      $region56: #{tpu_custom_call.1} parent=5 // pred_fallthru
        _
    $region6: #{tpu_custom_call.1} parent=1 // loop_footer
      %s19 = sadd.s32 1, %s15
    $region7: #{tpu_custom_call.1} parent=1 // loop_footer_branch
      %14 = sbr.rel target = $region3
    $region8: #{tpu_custom_call.1} parent=1 // loop_exit
      _
    %1294 = vsyncpa [#allocation4], 1
    %s1295 = scalar_lea.sflag [#allocation4], 1
    %1296 = vsyncpa %s1295, 1
    %1297 = vsyncpa [#allocation5], 1
    %s1298 = scalar_lea.sflag [#allocation5], 1
    %1299 = vsyncpa %s1298, 1

</llo_original>
